<compile_context>
chip_gen: v6e
topology: v6e:2x2x1
jax: 0.10.0
libtpu: 0.0.40
codegen_flags: <defaults>
</compile_context>

<pallas_src>
import jax
import jax.numpy as jnp
from jax.experimental import pallas as pl
from jax.experimental.pallas import tpu as pltpu


# ----------------------------------------------------------------------------
# Pallas kernel
# ----------------------------------------------------------------------------

def _asp_kernel(x_ref, w1t_ref, b1_ref, w2t_ref, b2_ref, o_ref):
    """AttentiveStatsPool for one batch tile.

    x_ref   : (bb, T, C)  f32   activations, channels on lanes
    w1t_ref : (C, Bk)     bf16  linear1 weight, pre-transposed
    b1_ref  : (1, Bk)     f32
    w2t_ref : (Bk, C)     bf16  linear2 weight, pre-transposed
    b2_ref  : (1, C)      f32
    o_ref   : (bb, 2*C)   f32   [mean | std] per batch row (lane-dense)
    """
    x = x_ref[...]                                    # (bb, T, C) f32
    bb, T, C = x.shape

    # --- attention logits: two 1x1 convs as single batched 2-D MXU matmuls ----
    x2d = x.reshape(bb * T, C)                        # collapse batch into sublanes
    h = jnp.tanh(
        jnp.dot(x2d.astype(jnp.bfloat16), w1t_ref[...],
                preferred_element_type=jnp.float32) + b1_ref[...])        # (bb*T, Bk)
    logits = (jnp.dot(h.astype(jnp.bfloat16), w2t_ref[...],
                      preferred_element_type=jnp.float32) + b2_ref[...])  # (bb*T, C)
    logits = logits.reshape(bb, T, C)

    # --- softmax over time (axis=1, sublanes) ---------------------------------
    m = jnp.max(logits, axis=1, keepdims=True)
    ex = jnp.exp(logits - m)
    denom = jnp.sum(ex, axis=1, keepdims=True)
    alpha = ex * pl.reciprocal(denom, approx=True)    # EUP reciprocal (free slot)

    # --- weighted statistics ---------------------------------------------------
    mean = jnp.sum(alpha * x, axis=1)                            # (bb, C)
    var = jnp.sum(alpha * x * x, axis=1) - mean * mean
    std = jnp.sqrt(jnp.maximum(var, 1e-9))

    # Single lane-dense full-block store: [mean | std] == torch.cat(dim=1).
    o_ref[...] = jnp.concatenate([mean, std], axis=-1)           # (bb, 2*C)


# ----------------------------------------------------------------------------
# Wrapper
# ----------------------------------------------------------------------------

def attentive_stats_pool(x, params, *, batch_block=None):
    """x: (B, C, T) float32 (PyTorch NCL layout)  ->  (B, 2*C) float32."""
    B, C, T = x.shape
    Bk = params["w1t"].shape[1]

    # Default: whole batch in one kernel step. For large B on v7x, pass a
    # batch_block < B (multiple of 8) to keep a 'parallel' axis across 2 TCs.
    bb = B if batch_block is None else batch_block
    assert B % bb == 0 and (bb == B or bb % 8 == 0), "bad batch_block"

    # Layout plumbing only: channels onto the lane axis.
    x_tc = jnp.transpose(x, (0, 2, 1))                # (B, T, C)

    return pl.pallas_call(
        _asp_kernel,
        out_shape=jax.ShapeDtypeStruct((B, 2 * C), jnp.float32),
        grid=(B // bb,),
        in_specs=[
            pl.BlockSpec((bb, T, C), lambda i: (i, 0, 0)),
            pl.BlockSpec((C, Bk), lambda i: (0, 0)),
            pl.BlockSpec((1, Bk), lambda i: (0, 0)),
            pl.BlockSpec((Bk, C), lambda i: (0, 0)),
            pl.BlockSpec((1, C), lambda i: (0, 0)),
        ],
        out_specs=pl.BlockSpec((bb, 2 * C), lambda i: (i, 0)),
        compiler_params=pltpu.CompilerParams(dimension_semantics=("parallel",)),
    )(x_tc, params["w1t"], params["b1"], params["w2t"], params["b2"])


# ----------------------------------------------------------------------------
# Parameters (deterministic synthetic weights) + pure-JAX reference
# ----------------------------------------------------------------------------

def init_asp_params(key, in_dim, bottleneck_dim):
    k1, k2, k3, k4 = jax.random.split(key, 4)
    # nn.Conv1d(kernel_size=1) weight is (out, in, 1); the tap dim is squeezed.
    w1 = jax.random.normal(k1, (bottleneck_dim, in_dim), jnp.float32) / jnp.sqrt(in_dim)
    b1 = 0.05 * jax.random.normal(k2, (bottleneck_dim,), jnp.float32)
    w2 = jax.random.normal(k3, (in_dim, bottleneck_dim), jnp.float32) / jnp.sqrt(bottleneck_dim)
    b2 = 0.05 * jax.random.normal(k4, (in_dim,), jnp.float32)

    # Pre-transpose / pre-cast once at init (no per-call wrapper transposes).
    kernel_params = dict(
        w1t=w1.T.astype(jnp.bfloat16),                # (C, Bk) bf16 MXU operand
        b1=b1.reshape(1, bottleneck_dim),             # f32
        w2t=w2.T.astype(jnp.bfloat16),                # (Bk, C) bf16 MXU operand
        b2=b2.reshape(1, in_dim),                     # f32
    )
    return (w1, b1, w2, b2), kernel_params


def asp_reference(x, w1, b1, w2, b2):
    """Pure-JAX f32 reference mirroring the PyTorch module."""
    a = jnp.tanh(jnp.einsum("kc,bct->bkt", w1, x) + b1[None, :, None])
    logits = jnp.einsum("ck,bkt->bct", w2, a) + b2[None, :, None]
    alpha = jax.nn.softmax(logits, axis=2)
    mean = jnp.sum(alpha * x, axis=2)
    residuals = jnp.sum(alpha * x * x, axis=2) - mean * mean
    std = jnp.sqrt(jnp.maximum(residuals, 1e-9))
    return jnp.concatenate([mean, std], axis=1)


# ----------------------------------------------------------------------------
# Main
# ----------------------------------------------------------------------------

if __name__ == "__main__":
    # Small shapes consistent with the module's usage in ECAPA-TDNN:
    # batch=2, in_dim (channels) = 192, bottleneck = 128, time = 16.
    B, C, T = 2, 192, 16
    BOTTLENECK = 128

    key = jax.random.PRNGKey(0)
    k_x, k_p = jax.random.split(key)
    x = jax.random.normal(k_x, (B, C, T), jnp.float32)

    (w1, b1, w2, b2), kernel_params = init_asp_params(k_p, C, BOTTLENECK)

    fwd = jax.jit(lambda inp: attentive_stats_pool(inp, kernel_params))
    out = fwd(x)
    jax.block_until_ready(out)

    ref = asp_reference(x, w1, b1, w2, b2)
    assert out.shape == (B, 2 * C), out.shape
    # bf16 MXU operands + approx reciprocal -> loose-but-safe tolerance vs f32 ref.
    assert jnp.allclose(out, ref, rtol=2e-2, atol=2e-2), (
        "max abs err = %g" % float(jnp.max(jnp.abs(out - ref))))

    print("KERNEL_OK")
</pallas_src>

<mosaic_0001>
module attributes {stable_mosaic.version = 11 : i64} {
  func.func @_asp_kernel(%arg0: i32, %arg1: memref<2x16x192xf32, #tpu.memory_space<vmem>>, %arg2: memref<192x128xbf16, #tpu.memory_space<vmem>>, %arg3: memref<1x128xf32, #tpu.memory_space<vmem>>, %arg4: memref<128x192xbf16, #tpu.memory_space<vmem>>, %arg5: memref<1x192xf32, #tpu.memory_space<vmem>>, %arg6: memref<2x384xf32, #tpu.memory_space<vmem>>) attributes {dimension_semantics = [#tpu.dimension_semantics<parallel>], iteration_bounds = array<i64: 1>, scalar_prefetch = 0 : i64, scratch_operands = 0 : i64, tpu.core_type = #tpu.core_type<tc>, window_params = [{transform_indices = @transform_0, window_bounds = array<i64: 2, 16, 192>}, {pipeline_mode = #tpu.pipeline_mode<synchronous>, transform_indices = @transform_1, window_bounds = array<i64: 192, 128>}, {pipeline_mode = #tpu.pipeline_mode<synchronous>, transform_indices = @transform_2, window_bounds = array<i64: 1, 128>}, {pipeline_mode = #tpu.pipeline_mode<synchronous>, transform_indices = @transform_3, window_bounds = array<i64: 128, 192>}, {pipeline_mode = #tpu.pipeline_mode<synchronous>, transform_indices = @transform_4, window_bounds = array<i64: 1, 192>}, {transform_indices = @transform_5, window_bounds = array<i64: 2, 384>}]} {
    %c0 = arith.constant 0 : index
    %c0_0 = arith.constant 0 : index
    %c0_1 = arith.constant 0 : index
    %0 = vector.load %arg1[%c0, %c0_0, %c0_1] : memref<2x16x192xf32, #tpu.memory_space<vmem>>, vector<2x16x192xf32>
    %1 = vector.shape_cast %0 : vector<2x16x192xf32> to vector<32x192xf32>
    %2 = arith.truncf %1 : vector<32x192xf32> to vector<32x192xbf16>
    %c0_2 = arith.constant 0 : index
    %c0_3 = arith.constant 0 : index
    %3 = vector.load %arg2[%c0_2, %c0_3] : memref<192x128xbf16, #tpu.memory_space<vmem>>, vector<192x128xbf16>
    %cst = arith.constant dense<0.000000e+00> : vector<32x128xf32>
    %4 = tpu.matmul %2, %3, %cst {dimension_numbers = #tpu.dot_dimension_numbers<[1], [0], [0], [1], [0, 0, 1, 1], [], []>} : vector<32x192xbf16>, vector<192x128xbf16>, vector<32x128xf32> -> vector<32x128xf32>
    %c0_4 = arith.constant 0 : index
    %c0_5 = arith.constant 0 : index
    %5 = vector.load %arg3[%c0_4, %c0_5] : memref<1x128xf32, #tpu.memory_space<vmem>>, vector<1x128xf32>
    %6 = vector.broadcast %5 : vector<1x128xf32> to vector<32x128xf32>
    %7 = arith.addf %4, %6 : vector<32x128xf32>
    %8 = math.tanh %7 : vector<32x128xf32>
    %9 = arith.truncf %8 : vector<32x128xf32> to vector<32x128xbf16>
    %c0_6 = arith.constant 0 : index
    %c0_7 = arith.constant 0 : index
    %10 = vector.load %arg4[%c0_6, %c0_7] : memref<128x192xbf16, #tpu.memory_space<vmem>>, vector<128x192xbf16>
    %cst_8 = arith.constant dense<0.000000e+00> : vector<32x192xf32>
    %11 = tpu.matmul %9, %10, %cst_8 {dimension_numbers = #tpu.dot_dimension_numbers<[1], [0], [0], [1], [0, 0, 1, 1], [], []>} : vector<32x128xbf16>, vector<128x192xbf16>, vector<32x192xf32> -> vector<32x192xf32>
    %c0_9 = arith.constant 0 : index
    %c0_10 = arith.constant 0 : index
    %12 = vector.load %arg5[%c0_9, %c0_10] : memref<1x192xf32, #tpu.memory_space<vmem>>, vector<1x192xf32>
    %13 = vector.broadcast %12 : vector<1x192xf32> to vector<32x192xf32>
    %14 = arith.addf %11, %13 : vector<32x192xf32>
    %15 = vector.shape_cast %14 : vector<32x192xf32> to vector<2x16x192xf32>
    %cst_11 = arith.constant dense<0xFF800000> : vector<2x192xf32>
    %16 = vector.multi_reduction <maximumf>, %15, %cst_11 [1] : vector<2x16x192xf32> to vector<2x192xf32>
    %17 = vector.shape_cast %16 : vector<2x192xf32> to vector<2x1x192xf32>
    %18 = vector.broadcast %17 : vector<2x1x192xf32> to vector<2x16x192xf32>
    %19 = arith.subf %15, %18 : vector<2x16x192xf32>
    %20 = math.exp %19 : vector<2x16x192xf32>
    %cst_12 = arith.constant dense<0.000000e+00> : vector<2x192xf32>
    %21 = vector.multi_reduction <add>, %20, %cst_12 [1] : vector<2x16x192xf32> to vector<2x192xf32>
    %22 = vector.shape_cast %21 : vector<2x192xf32> to vector<2x1x192xf32>
    %23 = tpu.reciprocal %22 {approx = true} : vector<2x1x192xf32> -> vector<2x1x192xf32>
    %24 = vector.broadcast %23 : vector<2x1x192xf32> to vector<2x16x192xf32>
    %25 = arith.mulf %20, %24 : vector<2x16x192xf32>
    %26 = arith.mulf %25, %0 : vector<2x16x192xf32>
    %cst_13 = arith.constant dense<0.000000e+00> : vector<2x192xf32>
    %27 = vector.multi_reduction <add>, %26, %cst_13 [1] : vector<2x16x192xf32> to vector<2x192xf32>
    %28 = arith.mulf %25, %0 : vector<2x16x192xf32>
    %29 = arith.mulf %28, %0 : vector<2x16x192xf32>
    %cst_14 = arith.constant dense<0.000000e+00> : vector<2x192xf32>
    %30 = vector.multi_reduction <add>, %29, %cst_14 [1] : vector<2x16x192xf32> to vector<2x192xf32>
    %31 = arith.mulf %27, %27 : vector<2x192xf32>
    %32 = arith.subf %30, %31 : vector<2x192xf32>
    %cst_15 = arith.constant 9.99999971E-10 : f32
    %33 = vector.broadcast %cst_15 : f32 to vector<2x192xf32>
    %34 = arith.maximumf %32, %33 : vector<2x192xf32>
    %35 = math.sqrt %34 : vector<2x192xf32>
    %36 = tpu.concatenate %27, %35 in 1 : vector<2x192xf32>, vector<2x192xf32> -> vector<2x384xf32>
    %c0_16 = arith.constant 0 : index
    %c0_17 = arith.constant 0 : index
    %37 = vector.load %arg6[%c0_16, %c0_17] : memref<2x384xf32, #tpu.memory_space<vmem>>, vector<2x384xf32>
    tpu.vector_store %arg6[%c0_16, %c0_17], %36 {strides = array<i32>} : memref<2x384xf32, #tpu.memory_space<vmem>>, vector<2x384xf32>,
    return
  }
  func.func @transform_0(%arg0: i32) -> (i32, i32, i32) {
    %c0_i32 = arith.constant 0 : i32
    %c0_i32_0 = arith.constant 0 : i32
    %c0_i32_1 = arith.constant 0 : i32
    return %arg0, %c0_i32, %c0_i32_0 : i32, i32, i32
  }
  func.func @transform_1(%arg0: i32) -> (i32, i32) {
    %c0_i32 = arith.constant 0 : i32
    %c0_i32_0 = arith.constant 0 : i32
    %c0_i32_1 = arith.constant 0 : i32
    return %c0_i32, %c0_i32_0 : i32, i32
  }
  func.func @transform_2(%arg0: i32) -> (i32, i32) {
    %c0_i32 = arith.constant 0 : i32
    %c0_i32_0 = arith.constant 0 : i32
    %c0_i32_1 = arith.constant 0 : i32
    return %c0_i32, %c0_i32_0 : i32, i32
  }
  func.func @transform_3(%arg0: i32) -> (i32, i32) {
    %c0_i32 = arith.constant 0 : i32
    %c0_i32_0 = arith.constant 0 : i32
    %c0_i32_1 = arith.constant 0 : i32
    return %c0_i32, %c0_i32_0 : i32, i32
  }
  func.func @transform_4(%arg0: i32) -> (i32, i32) {
    %c0_i32 = arith.constant 0 : i32
    %c0_i32_0 = arith.constant 0 : i32
    %c0_i32_1 = arith.constant 0 : i32
    return %c0_i32, %c0_i32_0 : i32, i32
  }
  func.func @transform_5(%arg0: i32) -> (i32, i32) {
    %c0_i32 = arith.constant 0 : i32
    %c0_i32_0 = arith.constant 0 : i32
    return %arg0, %c0_i32 : i32, i32
  }
}

</mosaic_0001>

<llo_original>
// kernel: _lambda_.1
$region0: #{_lambda_.1}
  #allocation0 [shape = 'u32[]', space=smem, size = 0x4, offset = 0x4, fixed_abs, tag = 'smem constant byte address 0x4 - core index']
  #allocation1 [shape = 'u32[144,128]{1,0:T(1,128)}', space=vmem, size = 0x12000, scoped, tag = 'internal scratch']
  %s0 = inlined_call_operand.hbm [shape: f32[2,16,192], index: 0, kind: input, shape index: {}]
  %s1 = inlined_call_operand.hbm [shape: bf16[192,128], index: 1, kind: input, shape index: {}]
  %s2 = inlined_call_operand.vmem [shape: f32[1,128], index: 2, kind: input, shape index: {}]
  %s3 = inlined_call_operand.hbm [shape: bf16[128,192], index: 3, kind: input, shape index: {}]
  %s4 = inlined_call_operand.vmem [shape: f32[1,192], index: 4, kind: input, shape index: {}]
  %s5 = inlined_call_operand.hbm [shape: f32[2,384], index: 5, kind: output, shape index: {}]
  %s6 = sld [smem:[#allocation0]]
  $region42: #{_lambda_.1} parent=0
    _
  %s8 = ssub.s32 1, %s6
  %s9 = scalar_select 0, %s8, %s6
  $region1: #{_lambda_.1} parent=0
    #allocation2 [shape = 'u8[32768]{0}', space=vmem, size = 0x8000, scoped, tag = 'input window, operand 0, single buffered']
    #allocation3 [shape = 's32[1]{0}', space=sflag, size = 0x4, scoped, tag = 'scoped memory for _lambda_.1']
    #allocation4 [shape = 's32[1]{0}', space=sflag, size = 0x4, scoped, tag = 'scoped memory for _lambda_.1']
    #allocation5 [shape = 'u8[49152]{0}', space=vmem, size = 0xc000, scoped, tag = 'input window, operand 1, single buffered']
    #allocation6 [shape = 's32[1]{0}', space=sflag, size = 0x4, scoped, tag = 'scoped memory for _lambda_.1']
    #allocation7 [shape = 'u8[65536]{0}', space=vmem, size = 0x10000, scoped, tag = 'input window, operand 3, single buffered']
    #allocation8 [shape = 'u8[3072]{0}', space=vmem, size = 0xc00, scoped, tag = 'output window, operand 0, single buffered']
    %10 = vsyncpa [#allocation3], 0
    %11 = vsyncpa [#allocation6], 0
    %12 = vsyncpa [#allocation4], 0
    // Predicated region
    $region2: #{_lambda_.1} parent=1 // pred_check
      _
    $region3: #{_lambda_.1} parent=1 // pred_check_branch
      %14 = sbr.rel (0) target = $region5
    $region4: #{_lambda_.1} parent=1 // pred_region
      %s16 = ssub.s32 1024, 1024
      %17 = vsyncadd [#allocation3], %s16
      %s18 = sshll.u32 [#allocation2], 4
      %s19 = int_to_ptr.vmem [resolvable:$true] %s18
      %24 = dma.hbm_to_vmem [thread:$0]  %s0, 1024, %s19, [#allocation3], 256, 256, 16
    $region5: #{_lambda_.1} parent=1 // pred_fallthru
      _
    // Predicated region
    $region6: #{_lambda_.1} parent=1 // pred_check
      _
    $region7: #{_lambda_.1} parent=1 // pred_check_branch
      %26 = sbr.rel (0) target = $region9
    $region8: #{_lambda_.1} parent=1 // pred_region
      %s28 = ssub.s32 1536, 1536
      %29 = vsyncadd [#allocation6], %s28
      %s30 = sshll.u32 [#allocation5], 4
      %s31 = int_to_ptr.vmem [resolvable:$true] %s30
      %36 = dma.hbm_to_vmem [thread:$0]  %s1, 1536, %s31, [#allocation6], 64, 64, 4
    $region9: #{_lambda_.1} parent=1 // pred_fallthru
      _
    // Predicated region
    $region10: #{_lambda_.1} parent=1 // pred_check
      _
    $region11: #{_lambda_.1} parent=1 // pred_check_branch
      %38 = sbr.rel (0) target = $region13
    $region12: #{_lambda_.1} parent=1 // pred_region
      _
    $region13: #{_lambda_.1} parent=1 // pred_fallthru
      _
    // Predicated region
    $region14: #{_lambda_.1} parent=1 // pred_check
      _
    $region15: #{_lambda_.1} parent=1 // pred_check_branch
      %40 = sbr.rel (0) target = $region17
    $region16: #{_lambda_.1} parent=1 // pred_region
      %s42 = ssub.s32 2048, 2048
      %43 = vsyncadd [#allocation6], %s42
      %s44 = sshll.u32 [#allocation7], 4
      %s45 = int_to_ptr.vmem [resolvable:$true] %s44
      %50 = dma.hbm_to_vmem [thread:$0]  %s3, 2048, %s45, [#allocation6], 128, 128, 8
    $region17: #{_lambda_.1} parent=1 // pred_fallthru
      _
    // Predicated region
    $region18: #{_lambda_.1} parent=1 // pred_check
      _
    $region19: #{_lambda_.1} parent=1 // pred_check_branch
      %52 = sbr.rel (0) target = $region21
    $region20: #{_lambda_.1} parent=1 // pred_region
      _
    $region21: #{_lambda_.1} parent=1 // pred_fallthru
      _
    // Predicated region
    $region22: #{_lambda_.1} parent=1 // pred_check
      _
    $region23: #{_lambda_.1} parent=1 // pred_check_branch
      %54 = sbr.rel (0) target = $region25
    $region24: #{_lambda_.1} parent=1 // pred_region
      %55 = dma.done [#allocation3], 1024
    $region25: #{_lambda_.1} parent=1 // pred_fallthru
      _
    // Predicated region
    $region26: #{_lambda_.1} parent=1 // pred_check
      _
    $region27: #{_lambda_.1} parent=1 // pred_check_branch
      %57 = sbr.rel (0) target = $region29
    $region28: #{_lambda_.1} parent=1 // pred_region
      %58 = dma.done [#allocation6], 1536
    $region29: #{_lambda_.1} parent=1 // pred_fallthru
      _
    // Predicated region
    $region30: #{_lambda_.1} parent=1 // pred_check
      _
    $region31: #{_lambda_.1} parent=1 // pred_check_branch
      %60 = sbr.rel (0) target = $region33
    $region32: #{_lambda_.1} parent=1 // pred_region
      %61 = dma.done [#allocation6], 2048
    $region33: #{_lambda_.1} parent=1 // pred_fallthru
      _
    %v63 = vld [vmem:[#allocation2] sm:$0xff]
    %v64 = vld [vmem:[#allocation2 + $0x8] sm:$0xff]
    %v65 = vld [vmem:[#allocation2 + $0x10] sm:$0xff]
    %v66 = vld [vmem:[#allocation2 + $0x18] sm:$0xff]
    %v67 = vld [vmem:[#allocation2 + $0x20] sm:$0xff]
    %v68 = vld [vmem:[#allocation2 + $0x28] sm:$0xff]
    %v69 = vld [vmem:[#allocation2 + $0x30] sm:$0xff]
    %v70 = vld [vmem:[#allocation2 + $0x38] sm:$0xff]
    %v71 = vpack.c.bf16 %v65, %v63
    %v72 = vpack.c.bf16 %v66, %v64
    %v73 = vpack.c.bf16 %v69, %v67
    %v74 = vpack.c.bf16 %v70, %v68
    %v75 = vld [vmem:[#allocation5] sm:$0xf]
    %v76 = vld [vmem:[#allocation5 + $0x4] sm:$0xf]
    %v77 = vld [vmem:[#allocation5 + $0x8] sm:$0xf]
    %v78 = vld [vmem:[#allocation5 + $0xc] sm:$0xf]
    %v79 = vld [vmem:[#allocation5 + $0x10] sm:$0xf]
    %v80 = vld [vmem:[#allocation5 + $0x14] sm:$0xf]
    %v81 = vld [vmem:[#allocation5 + $0x18] sm:$0xf]
    %v82 = vld [vmem:[#allocation5 + $0x1c] sm:$0xf]
    %v83 = vld [vmem:[#allocation5 + $0x20] sm:$0xf]
    %v84 = vld [vmem:[#allocation5 + $0x24] sm:$0xf]
    %v85 = vld [vmem:[#allocation5 + $0x28] sm:$0xf]
    %v86 = vld [vmem:[#allocation5 + $0x2c] sm:$0xf]
    %v87 = vld [vmem:[#allocation5 + $0x30] sm:$0xf]
    %v88 = vld [vmem:[#allocation5 + $0x34] sm:$0xf]
    %v89 = vld [vmem:[#allocation5 + $0x38] sm:$0xf]
    %v90 = vld [vmem:[#allocation5 + $0x3c] sm:$0xf]
    %v91 = vld [vmem:[#allocation5 + $0x40] sm:$0xf]
    %v92 = vld [vmem:[#allocation5 + $0x44] sm:$0xf]
    %v93 = vld [vmem:[#allocation5 + $0x48] sm:$0xf]
    %v94 = vld [vmem:[#allocation5 + $0x4c] sm:$0xf]
    %v95 = vld [vmem:[#allocation5 + $0x50] sm:$0xf]
    %v96 = vld [vmem:[#allocation5 + $0x54] sm:$0xf]
    %v97 = vld [vmem:[#allocation5 + $0x58] sm:$0xf]
    %v98 = vld [vmem:[#allocation5 + $0x5c] sm:$0xf]
    %v99 = vld [vmem:[%s2] sm:$0x1]
    %v101 = vlaneseq
    %v102 = vshrl.u32 %v101, 7
    %v103 = vsub.s32 0, %v102
    %v104 = vrot.slane %v99, %v103
    %v130 = vunpack.c.l.b16 %v75
    %v131 = vunpack.c.l.b16 %v76
    %v132 = vunpack.c.l.b16 %v77
    %v133 = vunpack.c.l.b16 %v78
    %v134 = vunpack.c.l.b16 %v79
    %v135 = vunpack.c.l.b16 %v80
    %v136 = vunpack.c.l.b16 %v81
    %v137 = vunpack.c.l.b16 %v82
    %v138 = vunpack.c.l.b16 %v83
    %v139 = vunpack.c.l.b16 %v84
    %v140 = vunpack.c.l.b16 %v85
    %v141 = vunpack.c.l.b16 %v86
    %v142 = vunpack.c.l.b16 %v87
    %v143 = vunpack.c.l.b16 %v88
    %v144 = vunpack.c.l.b16 %v89
    %v145 = vunpack.c.l.b16 %v90
    %v146 = vunpack.c.l.b16 %v91
    %v147 = vunpack.c.l.b16 %v92
    %v148 = vunpack.c.l.b16 %v93
    %v149 = vunpack.c.l.b16 %v94
    %v150 = vunpack.c.l.b16 %v95
    %v151 = vunpack.c.l.b16 %v96
    %v152 = vunpack.c.l.b16 %v97
    %v153 = vunpack.c.l.b16 %v98
    %v154 = vpack.c.b16 %v131, %v130
    %v155 = vpack.c.b16 %v133, %v132
    %v156 = vpack.c.b16 %v135, %v134
    %v157 = vpack.c.b16 %v137, %v136
    %v158 = vpack.c.b16 %v139, %v138
    %v159 = vpack.c.b16 %v141, %v140
    %v160 = vpack.c.b16 %v143, %v142
    %v161 = vpack.c.b16 %v145, %v144
    %v162 = vpack.c.b16 %v147, %v146
    %v163 = vpack.c.b16 %v149, %v148
    %v164 = vpack.c.b16 %v151, %v150
    %v165 = vpack.c.b16 %v153, %v152
    %vm178 = vcmask 523264
    %v180 = vsel %vm178, %v72, 0
    %v183 = vsel %vm178, %v74, 0
    %185 = vmatprep.subr.bf16.mxu0 0
    %186 = vmatpush1.bf16.msra.mxu0 %v161
    %187 = vmatprep.subr.bf16.mxu0 0
    %188 = vmatpush1.bf16.msra.mxu0 %v160
    %189 = vmatprep.subr.bf16.mxu0 0
    %190 = vmatpush1.bf16.msra.mxu0 %v159
    %191 = vmatprep.subr.bf16.mxu0 0
    %192 = vmatpush1.bf16.msra.mxu0 %v158
    %193 = vmatprep.subr.bf16.mxu0 0
    %194 = vmatpush1.bf16.msra.mxu0 %v157
    %195 = vmatprep.subr.bf16.mxu0 0
    %196 = vmatpush1.bf16.msra.mxu0 %v156
    %197 = vmatprep.subr.bf16.mxu0 0
    %198 = vmatpush1.bf16.msra.mxu0 %v155
    %199 = vmatprep.subr.bf16.mxu0 0
    %200 = vmatpush1.bf16.msra.mxu0 %v154
    %201 = vmatprep.subr.bf16.mxu0 0
    %202 = vmatpush2.bf16.msra.mxu0 0
    %203 = vmatprep.subr.bf16.mxu0 0
    %204 = vmatpush2.bf16.msra.mxu0 0
    %205 = vmatprep.subr.bf16.mxu0 0
    %206 = vmatpush2.bf16.msra.mxu0 0
    %207 = vmatprep.subr.bf16.mxu0 0
    %208 = vmatpush2.bf16.msra.mxu0 0
    %209 = vmatprep.subr.bf16.mxu0 0
    %210 = vmatpush2.bf16.msra.mxu0 %v165
    %211 = vmatprep.subr.bf16.mxu0 0
    %212 = vmatpush2.bf16.msra.mxu0 %v164
    %213 = vmatprep.subr.bf16.mxu0 0
    %214 = vmatpush2.bf16.msra.mxu0 %v163
    %215 = vmatprep.subr.bf16.mxu0 0
    %216 = vmatpush2.bf16.msra.mxu0 %v162
    %217 = vmatprep.mubr.bf16.mxu0 %v180
    %218 = vmatmul.mubr.bf16.gmra.mxu0 %v71
    %v219 = vpop.f32.mrf.mxu0
    %v220 = vadd.f32 %v104, %v219
    %v221 = vpop.f32.mrf.mxu0
    %v222 = vpop.f32.mrf.mxu0
    %v223 = vadd.f32 %v104, %v222
    %v224 = vpop.f32.mrf.mxu0
    %225 = vmatprep.mubr.bf16.mxu0 %v183
    %226 = vmatmul.mubr.bf16.gmra.mxu0 %v73
    %v227 = vpop.f32.mrf.mxu0
    %v228 = vadd.f32 %v104, %v227
    %v229 = vpop.f32.mrf.mxu0
    %v230 = vpop.f32.mrf.mxu0
    %v231 = vadd.f32 %v104, %v230
    %v232 = vpop.f32.mrf.mxu0
    %233 = vdwg.mxu0
    %v234 = vtanh.pop %v220
    %v235 = vtanh.pop %v223
    %v236 = vtanh.pop %v228
    %v237 = vtanh.pop %v231
    %v238 = vpack.c.bf16 %v235, %v234
    %v239 = vpack.c.bf16 %v237, %v236
    %v240 = vld [vmem:[#allocation7] sm:$0xff]
    %v241 = vld [vmem:[#allocation7 + $0x8] sm:$0xff]
    %v242 = vld [vmem:[#allocation7 + $0x10] sm:$0xff]
    %v243 = vld [vmem:[#allocation7 + $0x18] sm:$0xff]
    %v244 = vld [vmem:[#allocation7 + $0x20] sm:$0xff]
    %v245 = vld [vmem:[#allocation7 + $0x28] sm:$0xff]
    %v246 = vld [vmem:[#allocation7 + $0x30] sm:$0xff]
    %v247 = vld [vmem:[#allocation7 + $0x38] sm:$0xff]
    %v248 = vld [vmem:[#allocation7 + $0x40] sm:$0xff]
    %v249 = vld [vmem:[#allocation7 + $0x48] sm:$0xff]
    %v250 = vld [vmem:[#allocation7 + $0x50] sm:$0xff]
    %v251 = vld [vmem:[#allocation7 + $0x58] sm:$0xff]
    %v252 = vld [vmem:[#allocation7 + $0x60] sm:$0xff]
    %v253 = vld [vmem:[#allocation7 + $0x68] sm:$0xff]
    %v254 = vld [vmem:[#allocation7 + $0x70] sm:$0xff]
    %v255 = vld [vmem:[#allocation7 + $0x78] sm:$0xff]
    %v256 = vld [vmem:[%s4] sm:$0x3]
    %v258 = vlaneseq
    %v259 = vshrl.u32 %v258, 7
    %v260 = vsub.s32 0, %v259
    %v261 = vrot.slane %v256, %v260
    %v262 = vlaneseq
    %v263 = vshrl.u32 %v262, 7
    %v264 = vsub.s32 1, %v263
    %v265 = vrot.slane %v256, %v264
    %v284 = vunpack.c.l.b16 %v240
    %v285 = vunpack.c.h.b16 %v240
    %v286 = vunpack.c.l.b16 %v241
    %v287 = vunpack.c.h.b16 %v241
    %v288 = vunpack.c.l.b16 %v242
    %v289 = vunpack.c.h.b16 %v242
    %v290 = vunpack.c.l.b16 %v243
    %v291 = vunpack.c.h.b16 %v243
    %v292 = vunpack.c.l.b16 %v244
    %v293 = vunpack.c.h.b16 %v244
    %v294 = vunpack.c.l.b16 %v245
    %v295 = vunpack.c.h.b16 %v245
    %v296 = vunpack.c.l.b16 %v246
    %v297 = vunpack.c.h.b16 %v246
    %v298 = vunpack.c.l.b16 %v247
    %v299 = vunpack.c.h.b16 %v247
    %v300 = vunpack.c.l.b16 %v248
    %v301 = vunpack.c.h.b16 %v248
    %v302 = vunpack.c.l.b16 %v249
    %v303 = vunpack.c.h.b16 %v249
    %v304 = vunpack.c.l.b16 %v250
    %v305 = vunpack.c.h.b16 %v250
    %v306 = vunpack.c.l.b16 %v251
    %v307 = vunpack.c.h.b16 %v251
    %v308 = vunpack.c.l.b16 %v252
    %v309 = vunpack.c.h.b16 %v252
    %v310 = vunpack.c.l.b16 %v253
    %v311 = vunpack.c.h.b16 %v253
    %v312 = vunpack.c.l.b16 %v254
    %v313 = vunpack.c.h.b16 %v254
    %v314 = vunpack.c.l.b16 %v255
    %v315 = vunpack.c.h.b16 %v255
    %v316 = vpack.c.b16 %v286, %v284
    %v317 = vpack.c.b16 %v287, %v285
    %v318 = vpack.c.b16 %v290, %v288
    %v319 = vpack.c.b16 %v291, %v289
    %v320 = vpack.c.b16 %v294, %v292
    %v321 = vpack.c.b16 %v295, %v293
    %v322 = vpack.c.b16 %v298, %v296
    %v323 = vpack.c.b16 %v299, %v297
    %v324 = vpack.c.b16 %v302, %v300
    %v325 = vpack.c.b16 %v303, %v301
    %v326 = vpack.c.b16 %v306, %v304
    %v327 = vpack.c.b16 %v307, %v305
    %v328 = vpack.c.b16 %v310, %v308
    %v329 = vpack.c.b16 %v311, %v309
    %v330 = vpack.c.b16 %v314, %v312
    %v331 = vpack.c.b16 %v315, %v313
    %348 = vmatprep.subr.bf16.mxu0 %v331
    %349 = vmatpush1.bf16.msra.mxu0 %v330
    %350 = vmatprep.subr.bf16.mxu0 %v329
    %351 = vmatpush1.bf16.msra.mxu0 %v328
    %352 = vmatprep.subr.bf16.mxu0 %v327
    %353 = vmatpush1.bf16.msra.mxu0 %v326
    %354 = vmatprep.subr.bf16.mxu0 %v325
    %355 = vmatpush1.bf16.msra.mxu0 %v324
    %356 = vmatprep.subr.bf16.mxu0 %v323
    %357 = vmatpush1.bf16.msra.mxu0 %v322
    %358 = vmatprep.subr.bf16.mxu0 %v321
    %359 = vmatpush1.bf16.msra.mxu0 %v320
    %360 = vmatprep.subr.bf16.mxu0 %v319
    %361 = vmatpush1.bf16.msra.mxu0 %v318
    %362 = vmatprep.subr.bf16.mxu0 %v317
    %363 = vmatpush1.bf16.msra.mxu0 %v316
    %364 = vmatprep.subr.bf16.mxu0 0
    %365 = vmatpush2.bf16.msra.mxu0 0
    %366 = vmatprep.subr.bf16.mxu0 0
    %367 = vmatpush2.bf16.msra.mxu0 0
    %368 = vmatprep.subr.bf16.mxu0 0
    %369 = vmatpush2.bf16.msra.mxu0 0
    %370 = vmatprep.subr.bf16.mxu0 0
    %371 = vmatpush2.bf16.msra.mxu0 0
    %372 = vmatprep.subr.bf16.mxu0 0
    %373 = vmatpush2.bf16.msra.mxu0 0
    %374 = vmatprep.subr.bf16.mxu0 0
    %375 = vmatpush2.bf16.msra.mxu0 0
    %376 = vmatprep.subr.bf16.mxu0 0
    %377 = vmatpush2.bf16.msra.mxu0 0
    %378 = vmatprep.subr.bf16.mxu0 0
    %379 = vmatpush2.bf16.msra.mxu0 0
    %380 = vmatprep.mubr.bf16.mxu0 0
    %381 = vmatmul.mubr.bf16.gmra.mxu0 %v238
    %v382 = vpop.f32.mrf.mxu0
    %v383 = vadd.f32 %v261, %v382
    %v384 = vpop.f32.mrf.mxu0
    %v385 = vadd.f32 %v265, %v384
    %v386 = vpop.f32.mrf.mxu0
    %v387 = vadd.f32 %v261, %v386
    %v388 = vpop.f32.mrf.mxu0
    %v389 = vadd.f32 %v265, %v388
    %390 = vmatprep.mubr.bf16.mxu0 0
    %391 = vmatmul.mubr.bf16.gmra.mxu0 %v239
    %v392 = vpop.f32.mrf.mxu0
    %v393 = vadd.f32 %v261, %v392
    %v394 = vpop.f32.mrf.mxu0
    %v395 = vadd.f32 %v265, %v394
    %v396 = vpop.f32.mrf.mxu0
    %v397 = vadd.f32 %v261, %v396
    %v398 = vpop.f32.mrf.mxu0
    %v399 = vadd.f32 %v265, %v398
    %400 = vdwg.mxu0
    %v401 = vmax.f32 %v383, %v387
    %v402 = vrot.slane %v401, 4
    %v403 = vmax.f32 %v401, %v402
    %v404 = vrot.slane %v403, 2
    %v405 = vmax.f32 %v403, %v404
    %v406 = vrot.slane %v405, 1
    %v407 = vmax.f32 %v405, %v406
    %v408 = vsel %vm178, %v385, -inf
    %v409 = vsel %vm178, %v389, -inf
    %v410 = vmax.f32 %v408, %v409
    %v411 = vrot.slane %v410, 4
    %v412 = vmax.f32 %v410, %v411
    %v413 = vrot.slane %v412, 2
    %v414 = vmax.f32 %v412, %v413
    %v415 = vrot.slane %v414, 1
    %v416 = vmax.f32 %v414, %v415
    %v417 = vmax.f32 %v393, %v397
    %v418 = vrot.slane %v417, 4
    %v419 = vmax.f32 %v417, %v418
    %v420 = vrot.slane %v419, 2
    %v421 = vmax.f32 %v419, %v420
    %v422 = vrot.slane %v421, 1
    %v423 = vmax.f32 %v421, %v422
    %v424 = vsel %vm178, %v395, -inf
    %v425 = vsel %vm178, %v399, -inf
    %v426 = vmax.f32 %v424, %v425
    %v427 = vrot.slane %v426, 4
    %v428 = vmax.f32 %v426, %v427
    %v429 = vrot.slane %v428, 2
    %v430 = vmax.f32 %v428, %v429
    %v431 = vrot.slane %v430, 1
    %v432 = vmax.f32 %v430, %v431
    %v433 = vsub.f32 %v383, %v407
    %v434 = vsub.f32 %v385, %v416
    %v435 = vsub.f32 %v387, %v407
    %v436 = vsub.f32 %v389, %v416
    %v437 = vsub.f32 %v393, %v423
    %v438 = vsub.f32 %v395, %v432
    %v439 = vsub.f32 %v397, %v423
    %v440 = vsub.f32 %v399, %v432
    %v441 = vmul.f32 %v433, 1.442695
    %v442 = vpow.pop %v441
    %v443 = vmul.f32 %v434, 1.442695
    %v444 = vpow.pop %v443
    %v445 = vmul.f32 %v435, 1.442695
    %v446 = vpow.pop %v445
    %v447 = vmul.f32 %v436, 1.442695
    %v448 = vpow.pop %v447
    %v449 = vmul.f32 %v437, 1.442695
    %v450 = vpow.pop %v449
    %v451 = vmul.f32 %v438, 1.442695
    %v452 = vpow.pop %v451
    %v453 = vmul.f32 %v439, 1.442695
    %v454 = vpow.pop %v453
    %v455 = vmul.f32 %v440, 1.442695
    %v456 = vpow.pop %v455
    %v457 = vadd.f32 %v442, %v446
    %v458 = vrot.slane %v457, 4
    %v459 = vadd.f32 %v457, %v458
    %v460 = vrot.slane %v459, 2
    %v461 = vadd.f32 %v459, %v460
    %v462 = vrot.slane %v461, 1
    %v463 = vadd.f32 %v461, %v462
    %v464 = vsel %vm178, %v444, 0.0
    %v465 = vsel %vm178, %v448, 0.0
    %v466 = vadd.f32 %v464, %v465
    %v467 = vrot.slane %v466, 4
    %v468 = vadd.f32 %v466, %v467
    %v469 = vrot.slane %v468, 2
    %v470 = vadd.f32 %v468, %v469
    %v471 = vrot.slane %v470, 1
    %v472 = vadd.f32 %v470, %v471
    %v473 = vadd.f32 %v450, %v454
    %v474 = vrot.slane %v473, 4
    %v475 = vadd.f32 %v473, %v474
    %v476 = vrot.slane %v475, 2
    %v477 = vadd.f32 %v475, %v476
    %v478 = vrot.slane %v477, 1
    %v479 = vadd.f32 %v477, %v478
    %v480 = vsel %vm178, %v452, 0.0
    %v481 = vsel %vm178, %v456, 0.0
    %v482 = vadd.f32 %v480, %v481
    %v483 = vrot.slane %v482, 4
    %v484 = vadd.f32 %v482, %v483
    %v485 = vrot.slane %v484, 2
    %v486 = vadd.f32 %v484, %v485
    %v487 = vrot.slane %v486, 1
    %v488 = vadd.f32 %v486, %v487
    %v489 = vrcp.pop %v463
    %v490 = vrcp.pop %v472
    %v491 = vrcp.pop %v479
    %v492 = vrcp.pop %v488
    %v493 = vmul.f32 %v442, %v489
    %v494 = vmul.f32 %v444, %v490
    %v495 = vmul.f32 %v446, %v489
    %v496 = vmul.f32 %v448, %v490
    %v497 = vmul.f32 %v450, %v491
    %v498 = vmul.f32 %v452, %v492
    %v499 = vmul.f32 %v454, %v491
    %v500 = vmul.f32 %v456, %v492
    %v501 = vmul.f32 %v493, %v63
    %v502 = vmul.f32 %v494, %v64
    %v503 = vmul.f32 %v495, %v65
    %v504 = vmul.f32 %v496, %v66
    %v505 = vmul.f32 %v497, %v67
    %v506 = vmul.f32 %v498, %v68
    %v507 = vmul.f32 %v499, %v69
    %v508 = vmul.f32 %v500, %v70
    %v509 = vadd.f32 %v501, %v503
    %v510 = vrot.slane %v509, 4
    %v511 = vadd.f32 %v509, %v510
    %v512 = vrot.slane %v511, 2
    %v513 = vadd.f32 %v511, %v512
    %v514 = vrot.slane %v513, 1
    %v515 = vadd.f32 %v513, %v514
    %v516 = vsel %vm178, %v502, 0.0
    %v517 = vsel %vm178, %v504, 0.0
    %v518 = vadd.f32 %v516, %v517
    %v519 = vrot.slane %v518, 4
    %v520 = vadd.f32 %v518, %v519
    %v521 = vrot.slane %v520, 2
    %v522 = vadd.f32 %v520, %v521
    %v523 = vrot.slane %v522, 1
    %v524 = vadd.f32 %v522, %v523
    %v525 = vadd.f32 %v505, %v507
    %v526 = vrot.slane %v525, 4
    %v527 = vadd.f32 %v525, %v526
    %v528 = vrot.slane %v527, 2
    %v529 = vadd.f32 %v527, %v528
    %v530 = vrot.slane %v529, 1
    %v531 = vadd.f32 %v529, %v530
    %v532 = vsel %vm178, %v506, 0.0
    %v533 = vsel %vm178, %v508, 0.0
    %v534 = vadd.f32 %v532, %v533
    %v535 = vrot.slane %v534, 4
    %v536 = vadd.f32 %v534, %v535
    %v537 = vrot.slane %v536, 2
    %v538 = vadd.f32 %v536, %v537
    %v539 = vrot.slane %v538, 1
    %v540 = vadd.f32 %v538, %v539
    %v541 = vmul.f32 %v501, %v63
    %v542 = vmul.f32 %v502, %v64
    %v543 = vmul.f32 %v503, %v65
    %v544 = vmul.f32 %v504, %v66
    %v545 = vmul.f32 %v505, %v67
    %v546 = vmul.f32 %v506, %v68
    %v547 = vmul.f32 %v507, %v69
    %v548 = vmul.f32 %v508, %v70
    %v549 = vadd.f32 %v541, %v543
    %v550 = vrot.slane %v549, 4
    %v551 = vadd.f32 %v549, %v550
    %v552 = vrot.slane %v551, 2
    %v553 = vadd.f32 %v551, %v552
    %v554 = vrot.slane %v553, 1
    %v555 = vadd.f32 %v553, %v554
    %v556 = vsel %vm178, %v542, 0.0
    %v557 = vsel %vm178, %v544, 0.0
    %v558 = vadd.f32 %v556, %v557
    %v559 = vrot.slane %v558, 4
    %v560 = vadd.f32 %v558, %v559
    %v561 = vrot.slane %v560, 2
    %v562 = vadd.f32 %v560, %v561
    %v563 = vrot.slane %v562, 1
    %v564 = vadd.f32 %v562, %v563
    %v565 = vadd.f32 %v545, %v547
    %v566 = vrot.slane %v565, 4
    %v567 = vadd.f32 %v565, %v566
    %v568 = vrot.slane %v567, 2
    %v569 = vadd.f32 %v567, %v568
    %v570 = vrot.slane %v569, 1
    %v571 = vadd.f32 %v569, %v570
    %v572 = vsel %vm178, %v546, 0.0
    %v573 = vsel %vm178, %v548, 0.0
    %v574 = vadd.f32 %v572, %v573
    %v575 = vrot.slane %v574, 4
    %v576 = vadd.f32 %v574, %v575
    %v577 = vrot.slane %v576, 2
    %v578 = vadd.f32 %v576, %v577
    %v579 = vrot.slane %v578, 1
    %v580 = vadd.f32 %v578, %v579
    %v581 = vmul.f32 %v515, %v515
    %v582 = vmul.f32 %v524, %v524
    %v583 = vmul.f32 %v531, %v531
    %v584 = vmul.f32 %v540, %v540
    %v585 = vsub.f32 %v555, %v581
    %v586 = vsub.f32 %v564, %v582
    %v587 = vsub.f32 %v571, %v583
    %v588 = vsub.f32 %v580, %v584
    %v589 = vmax.f32 %v585, 1e-09
    %v590 = vmax.f32 %v586, 1e-09
    %v591 = vmax.f32 %v587, 1e-09
    %v592 = vmax.f32 %v588, 1e-09
    %v593 = vrsqrt.pop %v589
    %v594 = vmul.f32 %v589, %v593
    %vm595 = vcmp.eq.f32.partialorder %v589, inf
    %v596 = vsel %vm595, %v589, %v594
    %vm597 = vcmp.eq.f32.partialorder %v589, 0.0
    %v598 = vand.u32 %v589, 2147483648
    %v599 = vsel %vm597, %v598, %v596
    %v600 = vrsqrt.pop %v590
    %v601 = vmul.f32 %v590, %v600
    %vm602 = vcmp.eq.f32.partialorder %v590, inf
    %v603 = vsel %vm602, %v590, %v601
    %vm604 = vcmp.eq.f32.partialorder %v590, 0.0
    %v605 = vand.u32 %v590, 2147483648
    %v606 = vsel %vm604, %v605, %v603
    %v607 = vrsqrt.pop %v591
    %v608 = vmul.f32 %v591, %v607
    %vm609 = vcmp.eq.f32.partialorder %v591, inf
    %v610 = vsel %vm609, %v591, %v608
    %vm611 = vcmp.eq.f32.partialorder %v591, 0.0
    %v612 = vand.u32 %v591, 2147483648
    %v613 = vsel %vm611, %v612, %v610
    %v614 = vrsqrt.pop %v592
    %v615 = vmul.f32 %v592, %v614
    %vm616 = vcmp.eq.f32.partialorder %v592, inf
    %v617 = vsel %vm616, %v592, %v615
    %vm618 = vcmp.eq.f32.partialorder %v592, 0.0
    %v619 = vand.u32 %v592, 2147483648
    %v620 = vsel %vm618, %v619, %v617
    %vm625 = vcmask 1041409
    %v626 = vsel %vm625, %v531, %v515
    %v627 = vsel %vm625, %v540, %v524
    %v633 = vsel %vm625, %v613, %v599
    %v634 = vsel %vm625, %v620, %v606
    %635 = vrot.lane.b32.xlu0 %v633, 64
    %v636 = vpop.permute.xlu0 %635
    %637 = vrot.lane.b32.xlu0 %v634, 64
    %v638 = vpop.permute.xlu0 %637
    %v639 = vsel %vm178, %v636, %v638
    %v641 = vsel %vm178, %v627, %v636
    %v643 = vcombine.low %v626, %v641
    %v645 = vunpack.c.l.s4 1983009808
    %v646 = vunpack.c.0.s8 %v645
    %v647 = vlaneseq
    %v648 = vshrl.u32 %v647, 7
    %v649 = vsub.s32 %v646, %v648
    %v650 = vrot.slane %v643, %v649
    %v652 = vunpack.c.l.s4 1983009808
    %v653 = vunpack.c.0.s8 %v652
    %v654 = vlaneseq
    %v655 = vshrl.u32 %v654, 7
    %v656 = vsub.s32 %v653, %v655
    %v657 = vrot.slane %v639, %v656
    %v658 = vcombine.low %v650, %v657
    %660 = vst [vmem:[#allocation8] sm:$0x3f] %v658
    // Predicated region
    $region34: #{_lambda_.1} parent=1 // pred_check
      _
    $region35: #{_lambda_.1} parent=1 // pred_check_branch
      %662 = sbr.rel (0) target = $region37
    $region36: #{_lambda_.1} parent=1 // pred_region
      %s664 = ssub.s32 96, 96
      %665 = vsyncadd [#allocation4], %s664
      %s667 = sshll.u32 [#allocation8], 4
      %s668 = int_to_ptr.vmem [resolvable:$true] %s667
      %670 = dma.vmem_to_hbm [thread:$0]  %s668, 96, %s5, [#allocation4]
    $region37: #{_lambda_.1} parent=1 // pred_fallthru
      _
    // Predicated region
    $region38: #{_lambda_.1} parent=1 // pred_check
      _
    $region39: #{_lambda_.1} parent=1 // pred_check_branch
      %672 = sbr.rel (0) target = $region41
    $region40: #{_lambda_.1} parent=1 // pred_region
      %673 = dma.done [#allocation4], 96
    $region41: #{_lambda_.1} parent=1 // pred_fallthru
      _
    %674 = vsyncpa [#allocation3], 1
    %675 = vsyncpa [#allocation6], 1
    %676 = vsyncpa [#allocation4], 1

</llo_original>
